<compile_context>
chip_gen: v6e
topology: v6e:2x2x1
jax: 0.10.0
libtpu: 0.0.40
codegen_flags: <defaults>
</compile_context>

<pallas_src>
import functools

import jax
import jax.numpy as jnp
import numpy as np
from jax.experimental import pallas as pl
from jax.experimental.pallas import tpu as pltpu


# ----------------------------------------------------------------------------
# The fused kernel: whole forward pass on one (Bb, lanes) batch block.
# ----------------------------------------------------------------------------
def _fused_acmodel_kernel(img_ref,
                          w1_ref, b1_ref, w2_ref, b2_ref, w3_ref, b3_ref,
                          wh1_ref, bh1_ref, wh2_ref, bh2_ref,
                          out_ref):
    mm = functools.partial(jnp.dot, preferred_element_type=jnp.float32)
    qs = b1_ref.shape[1]                      # Hp*Wp*16 (= 144 for 7x7 obs)

    x = img_ref[...]                          # (Bb, H*W*3)  HWC-flat image rows

    # conv1 + folded 2x2 maxpool gather: one GEMM, 4-way lane-block max, bias, ReLU.
    y1 = mm(x, w1_ref[...])                   # (Bb, 4*qs) quadrant-major columns
    pooled = jnp.maximum(jnp.maximum(y1[:, 0 * qs:1 * qs], y1[:, 1 * qs:2 * qs]),
                         jnp.maximum(y1[:, 2 * qs:3 * qs], y1[:, 3 * qs:4 * qs]))
    pooled = jnp.maximum(pooled + b1_ref[...], 0.0)                 # (Bb, qs)

    # conv2 and conv3 as dense GEMMs on the HWC-flattened slabs.
    h2 = jnp.maximum(mm(pooled, w2_ref[...]) + b2_ref[...], 0.0)    # (Bb, 128)
    emb = jnp.maximum(mm(h2, w3_ref[...]) + b3_ref[...], 0.0)       # (Bb, 64)

    # Merged actor/critic heads (lane-dense 128-wide GEMMs).
    h = jnp.tanh(mm(emb, wh1_ref[...]) + bh1_ref[...])              # (Bb, 128)
    out = mm(h, wh2_ref[...]) + bh2_ref[...]                        # (Bb, n_act+1)

    # Stable log-softmax over the action logits; value rides in the last lane.
    n_act = out_ref.shape[1] - 1
    logits = out[:, :n_act]
    mx = jnp.max(logits, axis=1, keepdims=True)
    z = logits - mx
    lse = jnp.log(jnp.sum(jnp.exp(z), axis=1, keepdims=True))
    out_ref[...] = jnp.concatenate([z - lse, out[:, n_act:]], axis=1)


# ----------------------------------------------------------------------------
# Parameters (deterministic, in-script; mirrors module shapes + init_params)
# ----------------------------------------------------------------------------
def init_acmodel_params(key, n, m, n_actions):
    image_embedding_size = ((n - 1) // 2 - 2) * ((m - 1) // 2 - 2) * 64
    embedding_size = image_embedding_size  # use_memory=False, use_text=False
    ks = jax.random.split(key, 10)

    def conv_w(k, cin, cout):
        fan_in = 4 * cin
        return jax.random.normal(k, (2, 2, cin, cout), jnp.float32) / np.sqrt(fan_in)

    def conv_b(k, cout):
        return 0.1 * jax.random.normal(k, (cout,), jnp.float32)

    def linear(k, fin, fout):
        # init_params: W ~ N(0,1), row-normalized (per output unit); bias = 0
        w = jax.random.normal(k, (fout, fin), jnp.float32)        # torch (out, in)
        w = w / jnp.sqrt(jnp.sum(w * w, axis=1, keepdims=True))
        return w.T, jnp.zeros((fout,), jnp.float32)               # store (in, out)

    p = {}
    p["w1"], p["b1"] = conv_w(ks[0], 3, 16), conv_b(ks[1], 16)
    p["w2"], p["b2"] = conv_w(ks[2], 16, 32), conv_b(ks[3], 32)
    p["w3"], p["b3"] = conv_w(ks[4], 32, 64), conv_b(ks[5], 64)
    p["wa1"], p["ba1"] = linear(ks[6], embedding_size, 64)
    p["wa2"], p["ba2"] = linear(ks[7], 64, n_actions)
    p["wc1"], p["bc1"] = linear(ks[8], embedding_size, 64)
    p["wc2"], p["bc2"] = linear(ks[9], 64, 1)
    p["embedding_size"] = embedding_size
    p["obs_hw"] = (n, m)
    return p


def pack_params_for_kernel(p):
    """Repack torch-semantic params into the fused-kernel layout (done once, host side)."""
    H, W = p["obs_hw"]
    H1, W1 = H - 1, W - 1            # conv1 out
    Hp, Wp = H1 // 2, W1 // 2        # maxpool out
    H2, W2 = Hp - 1, Wp - 1          # conv2 out
    H3, W3 = H2 - 1, W2 - 1          # conv3 out
    C1, C2, C3 = 16, 32, 64
    n_act = p["wa2"].shape[1]

    w1 = np.asarray(p["w1"]); b1 = np.asarray(p["b1"])
    w2 = np.asarray(p["w2"]); b2 = np.asarray(p["b2"])
    w3 = np.asarray(p["w3"]); b3 = np.asarray(p["b3"])

    # conv1 as a dense matrix on the HWC-flattened image, with the 2x2 maxpool
    # gather folded in: columns = [pool-quadrant q] x [(hp,wp) pooled pos] x C1.
    qs = Hp * Wp * C1
    W1b = np.zeros((H * W * 3, 4 * qs), np.float32)
    for hp in range(Hp):
        for wp in range(Wp):
            col0 = (hp * Wp + wp) * C1
            for qh in range(2):
                for qw in range(2):
                    q = qh * 2 + qw
                    for kh in range(2):
                        for kw in range(2):
                            hh = 2 * hp + qh + kh
                            ww = 2 * wp + qw + kw
                            for c in range(3):
                                fin = (hh * W + ww) * 3 + c
                                W1b[fin, q * qs + col0:q * qs + col0 + C1] = w1[kh, kw, c, :]
    b1_flat = np.tile(b1, Hp * Wp).reshape(1, qs)

    # conv2 as a dense matrix on the pooled HWC-flat slab.
    W2b = np.zeros((qs, H2 * W2 * C2), np.float32)
    for h2 in range(H2):
        for w2i in range(W2):
            o0 = (h2 * W2 + w2i) * C2
            for kh in range(2):
                for kw in range(2):
                    for ci in range(C1):
                        iin = ((h2 + kh) * Wp + (w2i + kw)) * C1 + ci
                        W2b[iin, o0:o0 + C2] = w2[kh, kw, ci, :]
    b2_flat = np.tile(b2, H2 * W2).reshape(1, H2 * W2 * C2)

    # conv3 as a dense matrix on the conv2 HWC-flat slab.
    W3b = np.zeros((H2 * W2 * C2, H3 * W3 * C3), np.float32)
    for h3 in range(H3):
        for w3i in range(W3):
            o0 = (h3 * W3 + w3i) * C3
            for kh in range(2):
                for kw in range(2):
                    for ci in range(C2):
                        iin = ((h3 + kh) * W2 + (w3i + kw)) * C2 + ci
                        W3b[iin, o0:o0 + C3] = w3[kh, kw, ci, :]
    b3_flat = np.tile(b3, H3 * W3).reshape(1, H3 * W3 * C3)

    # Fold torch's NCHW flatten into the head first-layer weights: the kernel
    # produces the embedding in HWC flatten order (identity when conv3 out is 1x1).
    idx = np.arange(C3 * H3 * W3).reshape(C3, H3, W3)
    perm = np.transpose(idx, (1, 2, 0)).reshape(-1)
    wa1 = np.asarray(p["wa1"])[perm, :]
    wc1 = np.asarray(p["wc1"])[perm, :]
    hid = wa1.shape[1]

    # Merged first layer: one lane-dense (emb, 128) GEMM.
    wh1 = np.concatenate([wa1, wc1], axis=1)
    bh1 = np.concatenate([np.asarray(p["ba1"]), np.asarray(p["bc1"])]).reshape(1, -1)

    # Merged second layer: block-diagonal (128, n_act+1) -> [logits | value].
    wh2 = np.zeros((2 * hid, n_act + 1), np.float32)
    wh2[:hid, :n_act] = np.asarray(p["wa2"])
    wh2[hid:, n_act:] = np.asarray(p["wc2"])
    bh2 = np.concatenate([np.asarray(p["ba2"]), np.asarray(p["bc2"])]).reshape(1, -1)

    # TODO(synk): on v6e/v7x the GEMM operands could be stored as bf16 (f32
    # accumulate) for a further MXU/vreg win; kept f32 here to preserve the
    # tight numerical check against the f32 reference.
    f32 = lambda a: jnp.asarray(a, jnp.float32)
    return {"w1": f32(W1b), "b1": f32(b1_flat),
            "w2": f32(W2b), "b2": f32(b2_flat),
            "w3": f32(W3b), "b3": f32(b3_flat),
            "wh1": f32(wh1), "bh1": f32(bh1),
            "wh2": f32(wh2), "bh2": f32(bh2)}


# ----------------------------------------------------------------------------
# Forward pass (ACModel.forward with use_memory=False, use_text=False)
# ----------------------------------------------------------------------------
def _round_up(a, b):
    return ((a + b - 1) // b) * b


@functools.partial(jax.jit, static_argnames=("block_b",))
def acmodel_forward(image, memory, kp, block_b=128):
    # image: (B, H, W, 3) float32 == obs.image (NHWC, before torch's NCHW transpose)
    B = image.shape[0]
    n_act = kp["wh2"].shape[1] - 1
    feat = image.shape[1] * image.shape[2] * image.shape[3]

    x = image.reshape(B, feat).astype(jnp.float32)        # (B, H*W*3), HWC-flat rows
    Bb = min(block_b, _round_up(B, 8))                    # batch block (mult. of 8)
    B_pad = _round_up(B, Bb)
    if B_pad != B:
        x = jnp.pad(x, ((0, B_pad - B), (0, 0)))
    nb = B_pad // Bb

    weight_keys = ("w1", "b1", "w2", "b2", "w3", "b3", "wh1", "bh1", "wh2", "bh2")
    weights = [kp[k] for k in weight_keys]
    # Weights use constant block indices -> stay resident in VMEM across the grid.
    weight_specs = [pl.BlockSpec(w.shape, lambda i: (0, 0)) for w in weights]

    macs = sum(int(kp[k].shape[0]) * int(kp[k].shape[1])
               for k in ("w1", "w2", "w3", "wh1", "wh2"))
    weight_bytes = sum(int(np.prod(w.shape)) * 4 for w in weights)
    cost = pl.CostEstimate(
        flops=2 * B_pad * macs,
        transcendentals=B_pad * (int(kp["wh1"].shape[1]) + n_act + 1),
        bytes_accessed=B_pad * (feat + n_act + 1) * 4 + weight_bytes)

    out = pl.pallas_call(
        _fused_acmodel_kernel,
        out_shape=jax.ShapeDtypeStruct((B_pad, n_act + 1), jnp.float32),
        grid=(nb,),
        in_specs=[pl.BlockSpec((Bb, feat), lambda i: (i, 0))] + weight_specs,
        out_specs=pl.BlockSpec((Bb, n_act + 1), lambda i: (i, 0)),
        compiler_params=pltpu.CompilerParams(dimension_semantics=("parallel",)),
        cost_estimate=cost,
    )(x, *weights)

    logp = out[:B, :n_act]
    value = out[:B, n_act]
    # use_memory=False -> memory passes through unchanged.
    # TODO(synk): torch.distributions.Categorical has no Pallas equivalent;
    #             we return the normalized log-probabilities (its `logits`).
    return logp, value, memory


# ----------------------------------------------------------------------------
# Pure-JAX reference (torch semantics) for numerical verification
# ----------------------------------------------------------------------------
def reference_forward(image, memory, p):
    xc = jnp.transpose(image, (0, 3, 1, 2))  # NCHW

    def conv(x_nchw, w, b):
        w_oihw = jnp.transpose(w, (3, 2, 0, 1))
        y = jax.lax.conv_general_dilated(
            x_nchw, w_oihw, (1, 1), "VALID",
            dimension_numbers=("NCHW", "OIHW", "NCHW"))
        return y + b[None, :, None, None]

    y = jax.nn.relu(conv(xc, p["w1"], p["b1"]))
    y = jax.lax.reduce_window(y, -jnp.inf, jax.lax.max,
                              (1, 1, 2, 2), (1, 1, 2, 2), "VALID")
    y = jax.nn.relu(conv(y, p["w2"], p["b2"]))
    y = jax.nn.relu(conv(y, p["w3"], p["b3"]))
    emb = y.reshape(y.shape[0], -1)                        # NCHW flatten
    ha = jnp.tanh(emb @ p["wa1"] + p["ba1"])
    logp = jax.nn.log_softmax(ha @ p["wa2"] + p["ba2"], axis=1)
    hc = jnp.tanh(emb @ p["wc1"] + p["bc1"])
    value = (hc @ p["wc2"] + p["bc2"])[:, 0]
    return logp, value, memory


# ----------------------------------------------------------------------------
if __name__ == "__main__":
    H, W, A = 7, 7, 7                               # MiniGrid-like 7x7x3 obs, 7 actions
    key = jax.random.PRNGKey(0)
    k_img, k_mem, k_par, k_img2, k_mem2 = jax.random.split(key, 5)

    params = init_acmodel_params(k_par, H, W, A)
    kparams = pack_params_for_kernel(params)

    def check(image, memory, block_b=128):
        logp, value, mem_out = acmodel_forward(image, memory, kparams, block_b=block_b)
        jax.block_until_ready((logp, value, mem_out))
        ref_logp, ref_value, _ = reference_forward(image, memory, params)
        np.testing.assert_allclose(np.asarray(logp), np.asarray(ref_logp),
                                   rtol=1e-3, atol=1e-4)
        np.testing.assert_allclose(np.asarray(value), np.asarray(ref_value),
                                   rtol=1e-3, atol=1e-4)
        np.testing.assert_allclose(np.asarray(mem_out), np.asarray(memory),
                                   rtol=0, atol=0)

    # Small canonical case: B=2, single grid step.
    B = 2
    image = jax.random.uniform(k_img, (B, H, W, 3), jnp.float32)
    memory = jax.random.normal(k_mem, (B, 2 * params["embedding_size"]), jnp.float32)
    check(image, memory)

    # Ragged batch exercising the batch grid (+ padding): B=13, Bb=8 -> grid=(2,).
    B2 = 13
    image2 = jax.random.uniform(k_img2, (B2, H, W, 3), jnp.float32)
    memory2 = jax.random.normal(k_mem2, (B2, 2 * params["embedding_size"]), jnp.float32)
    check(image2, memory2, block_b=8)

    print("KERNEL_OK")
</pallas_src>

<mosaic_0001>
module attributes {stable_mosaic.version = 11 : i64} {
  func.func @_fused_acmodel_kernel(%arg0: i32, %arg1: memref<8x147xf32, #tpu.memory_space<vmem>>, %arg2: memref<147x576xf32, #tpu.memory_space<vmem>>, %arg3: memref<1x144xf32, #tpu.memory_space<vmem>>, %arg4: memref<144x128xf32, #tpu.memory_space<vmem>>, %arg5: memref<1x128xf32, #tpu.memory_space<vmem>>, %arg6: memref<128x64xf32, #tpu.memory_space<vmem>>, %arg7: memref<1x64xf32, #tpu.memory_space<vmem>>, %arg8: memref<64x128xf32, #tpu.memory_space<vmem>>, %arg9: memref<1x128xf32, #tpu.memory_space<vmem>>, %arg10: memref<128x8xf32, #tpu.memory_space<vmem>>, %arg11: memref<1x8xf32, #tpu.memory_space<vmem>>, %arg12: memref<8x8xf32, #tpu.memory_space<vmem>>) attributes {dimension_semantics = [#tpu.dimension_semantics<parallel>], iteration_bounds = array<i64: 1>, scalar_prefetch = 0 : i64, scratch_operands = 0 : i64, tpu.core_type = #tpu.core_type<tc>, window_params = [{transform_indices = @transform_0, window_bounds = array<i64: 8, 147>}, {pipeline_mode = #tpu.pipeline_mode<synchronous>, transform_indices = @transform_1, window_bounds = array<i64: 147, 576>}, {pipeline_mode = #tpu.pipeline_mode<synchronous>, transform_indices = @transform_2, window_bounds = array<i64: 1, 144>}, {pipeline_mode = #tpu.pipeline_mode<synchronous>, transform_indices = @transform_3, window_bounds = array<i64: 144, 128>}, {pipeline_mode = #tpu.pipeline_mode<synchronous>, transform_indices = @transform_4, window_bounds = array<i64: 1, 128>}, {pipeline_mode = #tpu.pipeline_mode<synchronous>, transform_indices = @transform_5, window_bounds = array<i64: 128, 64>}, {pipeline_mode = #tpu.pipeline_mode<synchronous>, transform_indices = @transform_6, window_bounds = array<i64: 1, 64>}, {pipeline_mode = #tpu.pipeline_mode<synchronous>, transform_indices = @transform_7, window_bounds = array<i64: 64, 128>}, {pipeline_mode = #tpu.pipeline_mode<synchronous>, transform_indices = @transform_8, window_bounds = array<i64: 1, 128>}, {pipeline_mode = #tpu.pipeline_mode<synchronous>, transform_indices = @transform_9, window_bounds = array<i64: 128, 8>}, {pipeline_mode = #tpu.pipeline_mode<synchronous>, transform_indices = @transform_10, window_bounds = array<i64: 1, 8>}, {transform_indices = @transform_11, window_bounds = array<i64: 8, 8>}]} {
    %c0 = arith.constant 0 : index
    %c0_0 = arith.constant 0 : index
    %0 = vector.load %arg1[%c0, %c0_0] : memref<8x147xf32, #tpu.memory_space<vmem>>, vector<8x147xf32>
    %c0_1 = arith.constant 0 : index
    %c0_2 = arith.constant 0 : index
    %1 = vector.load %arg2[%c0_1, %c0_2] : memref<147x576xf32, #tpu.memory_space<vmem>>, vector<147x576xf32>
    %cst = arith.constant dense<0.000000e+00> : vector<8x576xf32>
    %2 = tpu.matmul %0, %1, %cst {dimension_numbers = #tpu.dot_dimension_numbers<[1], [0], [0], [1], [0, 0, 1, 1], [], []>} : vector<8x147xf32>, vector<147x576xf32>, vector<8x576xf32> -> vector<8x576xf32>
    %3 = vector.extract_strided_slice %2 {offsets = [0, 0], sizes = [8, 144], strides = [1, 1]} : vector<8x576xf32> to vector<8x144xf32>
    %4 = vector.extract_strided_slice %2 {offsets = [0, 144], sizes = [8, 144], strides = [1, 1]} : vector<8x576xf32> to vector<8x144xf32>
    %5 = arith.maximumf %3, %4 : vector<8x144xf32>
    %6 = vector.extract_strided_slice %2 {offsets = [0, 288], sizes = [8, 144], strides = [1, 1]} : vector<8x576xf32> to vector<8x144xf32>
    %7 = vector.extract_strided_slice %2 {offsets = [0, 432], sizes = [8, 144], strides = [1, 1]} : vector<8x576xf32> to vector<8x144xf32>
    %8 = arith.maximumf %6, %7 : vector<8x144xf32>
    %9 = arith.maximumf %5, %8 : vector<8x144xf32>
    %c0_3 = arith.constant 0 : index
    %c0_4 = arith.constant 0 : index
    %10 = vector.load %arg3[%c0_3, %c0_4] : memref<1x144xf32, #tpu.memory_space<vmem>>, vector<1x144xf32>
    %11 = vector.broadcast %10 : vector<1x144xf32> to vector<8x144xf32>
    %12 = arith.addf %9, %11 : vector<8x144xf32>
    %cst_5 = arith.constant 0.000000e+00 : f32
    %13 = vector.broadcast %cst_5 : f32 to vector<8x144xf32>
    %14 = arith.maximumf %12, %13 : vector<8x144xf32>
    %c0_6 = arith.constant 0 : index
    %c0_7 = arith.constant 0 : index
    %15 = vector.load %arg4[%c0_6, %c0_7] : memref<144x128xf32, #tpu.memory_space<vmem>>, vector<144x128xf32>
    %cst_8 = arith.constant dense<0.000000e+00> : vector<8x128xf32>
    %16 = tpu.matmul %14, %15, %cst_8 {dimension_numbers = #tpu.dot_dimension_numbers<[1], [0], [0], [1], [0, 0, 1, 1], [], []>} : vector<8x144xf32>, vector<144x128xf32>, vector<8x128xf32> -> vector<8x128xf32>
    %c0_9 = arith.constant 0 : index
    %c0_10 = arith.constant 0 : index
    %17 = vector.load %arg5[%c0_9, %c0_10] : memref<1x128xf32, #tpu.memory_space<vmem>>, vector<1x128xf32>
    %18 = vector.broadcast %17 : vector<1x128xf32> to vector<8x128xf32>
    %19 = arith.addf %16, %18 : vector<8x128xf32>
    %cst_11 = arith.constant 0.000000e+00 : f32
    %20 = vector.broadcast %cst_11 : f32 to vector<8x128xf32>
    %21 = arith.maximumf %19, %20 : vector<8x128xf32>
    %c0_12 = arith.constant 0 : index
    %c0_13 = arith.constant 0 : index
    %22 = vector.load %arg6[%c0_12, %c0_13] : memref<128x64xf32, #tpu.memory_space<vmem>>, vector<128x64xf32>
    %cst_14 = arith.constant dense<0.000000e+00> : vector<8x64xf32>
    %23 = tpu.matmul %21, %22, %cst_14 {dimension_numbers = #tpu.dot_dimension_numbers<[1], [0], [0], [1], [0, 0, 1, 1], [], []>} : vector<8x128xf32>, vector<128x64xf32>, vector<8x64xf32> -> vector<8x64xf32>
    %c0_15 = arith.constant 0 : index
    %c0_16 = arith.constant 0 : index
    %24 = vector.load %arg7[%c0_15, %c0_16] : memref<1x64xf32, #tpu.memory_space<vmem>>, vector<1x64xf32>
    %25 = vector.broadcast %24 : vector<1x64xf32> to vector<8x64xf32>
    %26 = arith.addf %23, %25 : vector<8x64xf32>
    %cst_17 = arith.constant 0.000000e+00 : f32
    %27 = vector.broadcast %cst_17 : f32 to vector<8x64xf32>
    %28 = arith.maximumf %26, %27 : vector<8x64xf32>
    %c0_18 = arith.constant 0 : index
    %c0_19 = arith.constant 0 : index
    %29 = vector.load %arg8[%c0_18, %c0_19] : memref<64x128xf32, #tpu.memory_space<vmem>>, vector<64x128xf32>
    %cst_20 = arith.constant dense<0.000000e+00> : vector<8x128xf32>
    %30 = tpu.matmul %28, %29, %cst_20 {dimension_numbers = #tpu.dot_dimension_numbers<[1], [0], [0], [1], [0, 0, 1, 1], [], []>} : vector<8x64xf32>, vector<64x128xf32>, vector<8x128xf32> -> vector<8x128xf32>
    %c0_21 = arith.constant 0 : index
    %c0_22 = arith.constant 0 : index
    %31 = vector.load %arg9[%c0_21, %c0_22] : memref<1x128xf32, #tpu.memory_space<vmem>>, vector<1x128xf32>
    %32 = vector.broadcast %31 : vector<1x128xf32> to vector<8x128xf32>
    %33 = arith.addf %30, %32 : vector<8x128xf32>
    %34 = math.tanh %33 : vector<8x128xf32>
    %c0_23 = arith.constant 0 : index
    %c0_24 = arith.constant 0 : index
    %35 = vector.load %arg10[%c0_23, %c0_24] : memref<128x8xf32, #tpu.memory_space<vmem>>, vector<128x8xf32>
    %cst_25 = arith.constant dense<0.000000e+00> : vector<8x8xf32>
    %36 = tpu.matmul %34, %35, %cst_25 {dimension_numbers = #tpu.dot_dimension_numbers<[1], [0], [0], [1], [0, 0, 1, 1], [], []>} : vector<8x128xf32>, vector<128x8xf32>, vector<8x8xf32> -> vector<8x8xf32>
    %c0_26 = arith.constant 0 : index
    %c0_27 = arith.constant 0 : index
    %37 = vector.load %arg11[%c0_26, %c0_27] : memref<1x8xf32, #tpu.memory_space<vmem>>, vector<1x8xf32>
    %38 = vector.broadcast %37 : vector<1x8xf32> to vector<8x8xf32>
    %39 = arith.addf %36, %38 : vector<8x8xf32>
    %40 = vector.extract_strided_slice %39 {offsets = [0, 0], sizes = [8, 7], strides = [1, 1]} : vector<8x8xf32> to vector<8x7xf32>
    %cst_28 = arith.constant dense<0xFF800000> : vector<8xf32>
    %41 = vector.multi_reduction <maximumf>, %40, %cst_28 [1] : vector<8x7xf32> to vector<8xf32>
    %42 = vector.shape_cast %41 : vector<8xf32> to vector<8x1xf32>
    %43 = vector.broadcast %42 : vector<8x1xf32> to vector<8x7xf32>
    %44 = arith.subf %40, %43 : vector<8x7xf32>
    %45 = math.exp %44 : vector<8x7xf32>
    %cst_29 = arith.constant dense<0.000000e+00> : vector<8xf32>
    %46 = vector.multi_reduction <add>, %45, %cst_29 [1] : vector<8x7xf32> to vector<8xf32>
    %47 = vector.shape_cast %46 : vector<8xf32> to vector<8x1xf32>
    %48 = math.log %47 : vector<8x1xf32>
    %49 = vector.broadcast %48 : vector<8x1xf32> to vector<8x7xf32>
    %50 = arith.subf %44, %49 : vector<8x7xf32>
    %51 = vector.extract_strided_slice %39 {offsets = [0, 7], sizes = [8, 1], strides = [1, 1]} : vector<8x8xf32> to vector<8x1xf32>
    %52 = tpu.concatenate %50, %51 in 1 : vector<8x7xf32>, vector<8x1xf32> -> vector<8x8xf32>
    %c0_30 = arith.constant 0 : index
    %c0_31 = arith.constant 0 : index
    %53 = vector.load %arg12[%c0_30, %c0_31] : memref<8x8xf32, #tpu.memory_space<vmem>>, vector<8x8xf32>
    tpu.vector_store %arg12[%c0_30, %c0_31], %52 {strides = array<i32>} : memref<8x8xf32, #tpu.memory_space<vmem>>, vector<8x8xf32>,
    return
  }
  func.func @transform_0(%arg0: i32) -> (i32, i32) {
    %c0_i32 = arith.constant 0 : i32
    %c0_i32_0 = arith.constant 0 : i32
    return %arg0, %c0_i32 : i32, i32
  }
  func.func @transform_1(%arg0: i32) -> (i32, i32) {
    %c0_i32 = arith.constant 0 : i32
    %c0_i32_0 = arith.constant 0 : i32
    %c0_i32_1 = arith.constant 0 : i32
    return %c0_i32, %c0_i32_0 : i32, i32
  }
  func.func @transform_2(%arg0: i32) -> (i32, i32) {
    %c0_i32 = arith.constant 0 : i32
    %c0_i32_0 = arith.constant 0 : i32
    %c0_i32_1 = arith.constant 0 : i32
    return %c0_i32, %c0_i32_0 : i32, i32
  }
  func.func @transform_3(%arg0: i32) -> (i32, i32) {
    %c0_i32 = arith.constant 0 : i32
    %c0_i32_0 = arith.constant 0 : i32
    %c0_i32_1 = arith.constant 0 : i32
    return %c0_i32, %c0_i32_0 : i32, i32
  }
  func.func @transform_4(%arg0: i32) -> (i32, i32) {
    %c0_i32 = arith.constant 0 : i32
    %c0_i32_0 = arith.constant 0 : i32
    %c0_i32_1 = arith.constant 0 : i32
    return %c0_i32, %c0_i32_0 : i32, i32
  }
  func.func @transform_5(%arg0: i32) -> (i32, i32) {
    %c0_i32 = arith.constant 0 : i32
    %c0_i32_0 = arith.constant 0 : i32
    %c0_i32_1 = arith.constant 0 : i32
    return %c0_i32, %c0_i32_0 : i32, i32
  }
  func.func @transform_6(%arg0: i32) -> (i32, i32) {
    %c0_i32 = arith.constant 0 : i32
    %c0_i32_0 = arith.constant 0 : i32
    %c0_i32_1 = arith.constant 0 : i32
    return %c0_i32, %c0_i32_0 : i32, i32
  }
  func.func @transform_7(%arg0: i32) -> (i32, i32) {
    %c0_i32 = arith.constant 0 : i32
    %c0_i32_0 = arith.constant 0 : i32
    %c0_i32_1 = arith.constant 0 : i32
    return %c0_i32, %c0_i32_0 : i32, i32
  }
  func.func @transform_8(%arg0: i32) -> (i32, i32) {
    %c0_i32 = arith.constant 0 : i32
    %c0_i32_0 = arith.constant 0 : i32
    %c0_i32_1 = arith.constant 0 : i32
    return %c0_i32, %c0_i32_0 : i32, i32
  }
  func.func @transform_9(%arg0: i32) -> (i32, i32) {
    %c0_i32 = arith.constant 0 : i32
    %c0_i32_0 = arith.constant 0 : i32
    %c0_i32_1 = arith.constant 0 : i32
    return %c0_i32, %c0_i32_0 : i32, i32
  }
  func.func @transform_10(%arg0: i32) -> (i32, i32) {
    %c0_i32 = arith.constant 0 : i32
    %c0_i32_0 = arith.constant 0 : i32
    %c0_i32_1 = arith.constant 0 : i32
    return %c0_i32, %c0_i32_0 : i32, i32
  }
  func.func @transform_11(%arg0: i32) -> (i32, i32) {
    %c0_i32 = arith.constant 0 : i32
    %c0_i32_0 = arith.constant 0 : i32
    return %arg0, %c0_i32 : i32, i32
  }
}

</mosaic_0001>

<llo_original>
// kernel: acmodel_forward.1
$region0: #{acmodel_forward.1}
  #allocation0 [shape = 'u32[]', space=smem, size = 0x4, offset = 0x4, fixed_abs, tag = 'smem constant byte address 0x4 - core index']
  #allocation1 [shape = 'u32[144,128]{1,0:T(1,128)}', space=vmem, size = 0x12000, scoped, tag = 'internal scratch']
  %s0 = inlined_call_operand.vmem [shape: f32[8,147], index: 0, kind: input, shape index: {}]
  %s1 = inlined_call_operand.hbm [shape: f32[147,576], index: 1, kind: input, shape index: {}]
  %s2 = inlined_call_operand.vmem [shape: f32[1,144], index: 2, kind: input, shape index: {}]
  %s3 = inlined_call_operand.vmem [shape: f32[144,128], index: 3, kind: input, shape index: {}]
  %s4 = inlined_call_operand.vmem [shape: f32[1,128], index: 4, kind: input, shape index: {}]
  %s5 = inlined_call_operand.vmem [shape: f32[128,64], index: 5, kind: input, shape index: {}]
  %s6 = inlined_call_operand.vmem [shape: f32[1,64], index: 6, kind: input, shape index: {}]
  %s7 = inlined_call_operand.vmem [shape: f32[64,128], index: 7, kind: input, shape index: {}]
  %s8 = inlined_call_operand.vmem [shape: f32[1,128], index: 8, kind: input, shape index: {}]
  %s9 = inlined_call_operand.vmem [shape: f32[128,8], index: 9, kind: input, shape index: {}]
  %s10 = inlined_call_operand.vmem [shape: f32[1,8], index: 10, kind: input, shape index: {}]
  %s11 = inlined_call_operand.vmem [shape: f32[8,8], index: 11, kind: output, shape index: {}]
  %s12 = sld [smem:[#allocation0]]
  $region58: #{acmodel_forward.1} parent=0
    _
  %s14 = ssub.s32 1, %s12
  %s15 = scalar_select 0, %s14, %s12
  $region1: #{acmodel_forward.1} parent=0
    #allocation2 [shape = 'u8[389120]{0}', space=vmem, size = 0x5f000, scoped, tag = 'input window, operand 1, single buffered']
    #allocation3 [shape = 's32[1]{0}', space=sflag, size = 0x4, scoped, tag = 'scoped memory for acmodel_forward.1']
    %16 = vsyncpa [#allocation3], 0
    // Predicated region
    $region2: #{acmodel_forward.1} parent=1 // pred_check
      _
    $region3: #{acmodel_forward.1} parent=1 // pred_check_branch
      %18 = sbr.rel (0) target = $region5
    $region4: #{acmodel_forward.1} parent=1 // pred_region
      _
    $region5: #{acmodel_forward.1} parent=1 // pred_fallthru
      _
    // Predicated region
    $region6: #{acmodel_forward.1} parent=1 // pred_check
      _
    $region7: #{acmodel_forward.1} parent=1 // pred_check_branch
      %20 = sbr.rel (0) target = $region9
    $region8: #{acmodel_forward.1} parent=1 // pred_region
      %s22 = ssub.s32 12160, 12160
      %23 = vsyncadd [#allocation3], %s22
      %s24 = sshll.u32 [#allocation2], 4
      %s25 = int_to_ptr.vmem [resolvable:$true] %s24
      %30 = dma.hbm_to_vmem [thread:$0]  %s1, 12160, %s25, [#allocation3], 640, 640, 40
    $region9: #{acmodel_forward.1} parent=1 // pred_fallthru
      _
    // Predicated region
    $region10: #{acmodel_forward.1} parent=1 // pred_check
      _
    $region11: #{acmodel_forward.1} parent=1 // pred_check_branch
      %32 = sbr.rel (0) target = $region13
    $region12: #{acmodel_forward.1} parent=1 // pred_region
      _
    $region13: #{acmodel_forward.1} parent=1 // pred_fallthru
      _
    // Predicated region
    $region14: #{acmodel_forward.1} parent=1 // pred_check
      _
    $region15: #{acmodel_forward.1} parent=1 // pred_check_branch
      %34 = sbr.rel (0) target = $region17
    $region16: #{acmodel_forward.1} parent=1 // pred_region
      _
    $region17: #{acmodel_forward.1} parent=1 // pred_fallthru
      _
    // Predicated region
    $region18: #{acmodel_forward.1} parent=1 // pred_check
      _
    $region19: #{acmodel_forward.1} parent=1 // pred_check_branch
      %36 = sbr.rel (0) target = $region21
    $region20: #{acmodel_forward.1} parent=1 // pred_region
      _
    $region21: #{acmodel_forward.1} parent=1 // pred_fallthru
      _
    // Predicated region
    $region22: #{acmodel_forward.1} parent=1 // pred_check
      _
    $region23: #{acmodel_forward.1} parent=1 // pred_check_branch
      %38 = sbr.rel (0) target = $region25
    $region24: #{acmodel_forward.1} parent=1 // pred_region
      _
    $region25: #{acmodel_forward.1} parent=1 // pred_fallthru
      _
    // Predicated region
    $region26: #{acmodel_forward.1} parent=1 // pred_check
      _
    $region27: #{acmodel_forward.1} parent=1 // pred_check_branch
      %40 = sbr.rel (0) target = $region29
    $region28: #{acmodel_forward.1} parent=1 // pred_region
      _
    $region29: #{acmodel_forward.1} parent=1 // pred_fallthru
      _
    // Predicated region
    $region30: #{acmodel_forward.1} parent=1 // pred_check
      _
    $region31: #{acmodel_forward.1} parent=1 // pred_check_branch
      %42 = sbr.rel (0) target = $region33
    $region32: #{acmodel_forward.1} parent=1 // pred_region
      _
    $region33: #{acmodel_forward.1} parent=1 // pred_fallthru
      _
    // Predicated region
    $region34: #{acmodel_forward.1} parent=1 // pred_check
      _
    $region35: #{acmodel_forward.1} parent=1 // pred_check_branch
      %44 = sbr.rel (0) target = $region37
    $region36: #{acmodel_forward.1} parent=1 // pred_region
      _
    $region37: #{acmodel_forward.1} parent=1 // pred_fallthru
      _
    // Predicated region
    $region38: #{acmodel_forward.1} parent=1 // pred_check
      _
    $region39: #{acmodel_forward.1} parent=1 // pred_check_branch
      %46 = sbr.rel (0) target = $region41
    $region40: #{acmodel_forward.1} parent=1 // pred_region
      _
    $region41: #{acmodel_forward.1} parent=1 // pred_fallthru
      _
    // Predicated region
    $region42: #{acmodel_forward.1} parent=1 // pred_check
      _
    $region43: #{acmodel_forward.1} parent=1 // pred_check_branch
      %48 = sbr.rel (0) target = $region45
    $region44: #{acmodel_forward.1} parent=1 // pred_region
      _
    $region45: #{acmodel_forward.1} parent=1 // pred_fallthru
      _
    // Predicated region
    $region46: #{acmodel_forward.1} parent=1 // pred_check
      _
    $region47: #{acmodel_forward.1} parent=1 // pred_check_branch
      %50 = sbr.rel (0) target = $region49
    $region48: #{acmodel_forward.1} parent=1 // pred_region
      %51 = dma.done [#allocation3], 12160
    $region49: #{acmodel_forward.1} parent=1 // pred_fallthru
      _
    %v52 = vld [vmem:[%s0] sm:$0xff]
    %v53 = vld [vmem:[%s0 + $0x8] sm:$0xff]
    %v54 = vld [vmem:[#allocation2] sm:$0xff]
    %v55 = vld [vmem:[#allocation2 + $0x8] sm:$0xff]
    %v56 = vld [vmem:[#allocation2 + $0x10] sm:$0xff]
    %v57 = vld [vmem:[#allocation2 + $0x18] sm:$0xff]
    %v58 = vld [vmem:[#allocation2 + $0x20] sm:$0xff]
    %v59 = vld [vmem:[#allocation2 + $0x28] sm:$0xff]
    %v60 = vld [vmem:[#allocation2 + $0x30] sm:$0xff]
    %v61 = vld [vmem:[#allocation2 + $0x38] sm:$0xff]
    %v62 = vld [vmem:[#allocation2 + $0x40] sm:$0xff]
    %v63 = vld [vmem:[#allocation2 + $0x48] sm:$0xff]
    %v64 = vld [vmem:[#allocation2 + $0x50] sm:$0xff]
    %v65 = vld [vmem:[#allocation2 + $0x58] sm:$0xff]
    %v66 = vld [vmem:[#allocation2 + $0x60] sm:$0xff]
    %v67 = vld [vmem:[#allocation2 + $0x68] sm:$0xff]
    %v68 = vld [vmem:[#allocation2 + $0x70] sm:$0xff]
    %v69 = vld [vmem:[#allocation2 + $0x78] sm:$0xff]
    %v70 = vld [vmem:[#allocation2 + $0x80] sm:$0xff]
    %v71 = vld [vmem:[#allocation2 + $0x88] sm:$0xff]
    %v72 = vld [vmem:[#allocation2 + $0x90] sm:$0xff]
    %v73 = vld [vmem:[#allocation2 + $0x98] sm:$0xff]
    %v74 = vld [vmem:[#allocation2 + $0xa0] sm:$0xff]
    %v75 = vld [vmem:[#allocation2 + $0xa8] sm:$0xff]
    %v76 = vld [vmem:[#allocation2 + $0xb0] sm:$0xff]
    %v77 = vld [vmem:[#allocation2 + $0xb8] sm:$0xff]
    %v78 = vld [vmem:[#allocation2 + $0xc0] sm:$0xff]
    %v79 = vld [vmem:[#allocation2 + $0xc8] sm:$0xff]
    %v80 = vld [vmem:[#allocation2 + $0xd0] sm:$0xff]
    %v81 = vld [vmem:[#allocation2 + $0xd8] sm:$0xff]
    %v82 = vld [vmem:[#allocation2 + $0xe0] sm:$0xff]
    %v83 = vld [vmem:[#allocation2 + $0xe8] sm:$0xff]
    %v84 = vld [vmem:[#allocation2 + $0xf0] sm:$0xff]
    %v85 = vld [vmem:[#allocation2 + $0xf8] sm:$0xff]
    %v86 = vld [vmem:[#allocation2 + $0x100] sm:$0xff]
    %v87 = vld [vmem:[#allocation2 + $0x108] sm:$0xff]
    %v88 = vld [vmem:[#allocation2 + $0x110] sm:$0xff]
    %v89 = vld [vmem:[#allocation2 + $0x118] sm:$0xff]
    %v90 = vld [vmem:[#allocation2 + $0x120] sm:$0xff]
    %v91 = vld [vmem:[#allocation2 + $0x128] sm:$0xff]
    %v92 = vld [vmem:[#allocation2 + $0x130] sm:$0xff]
    %v93 = vld [vmem:[#allocation2 + $0x138] sm:$0xff]
    %v94 = vld [vmem:[#allocation2 + $0x140] sm:$0xff]
    %v95 = vld [vmem:[#allocation2 + $0x148] sm:$0xff]
    %v96 = vld [vmem:[#allocation2 + $0x150] sm:$0xff]
    %v97 = vld [vmem:[#allocation2 + $0x158] sm:$0xff]
    %v98 = vld [vmem:[#allocation2 + $0x160] sm:$0xff]
    %v99 = vld [vmem:[#allocation2 + $0x168] sm:$0xff]
    %v100 = vld [vmem:[#allocation2 + $0x170] sm:$0xff]
    %v101 = vld [vmem:[#allocation2 + $0x178] sm:$0xff]
    %v102 = vld [vmem:[#allocation2 + $0x180] sm:$0xff]
    %v103 = vld [vmem:[#allocation2 + $0x188] sm:$0xff]
    %v104 = vld [vmem:[#allocation2 + $0x190] sm:$0xff]
    %v105 = vld [vmem:[#allocation2 + $0x198] sm:$0xff]
    %v106 = vld [vmem:[#allocation2 + $0x1a0] sm:$0xff]
    %v107 = vld [vmem:[#allocation2 + $0x1a8] sm:$0xff]
    %v108 = vld [vmem:[#allocation2 + $0x1b0] sm:$0xff]
    %v109 = vld [vmem:[#allocation2 + $0x1b8] sm:$0xff]
    %v110 = vld [vmem:[#allocation2 + $0x1c0] sm:$0xff]
    %v111 = vld [vmem:[#allocation2 + $0x1c8] sm:$0xff]
    %v112 = vld [vmem:[#allocation2 + $0x1d0] sm:$0xff]
    %v113 = vld [vmem:[#allocation2 + $0x1d8] sm:$0xff]
    %v114 = vld [vmem:[#allocation2 + $0x1e0] sm:$0xff]
    %v115 = vld [vmem:[#allocation2 + $0x1e8] sm:$0xff]
    %v116 = vld [vmem:[#allocation2 + $0x1f0] sm:$0xff]
    %v117 = vld [vmem:[#allocation2 + $0x1f8] sm:$0xff]
    %v118 = vld [vmem:[#allocation2 + $0x200] sm:$0xff]
    %v119 = vld [vmem:[#allocation2 + $0x208] sm:$0xff]
    %v120 = vld [vmem:[#allocation2 + $0x210] sm:$0xff]
    %v121 = vld [vmem:[#allocation2 + $0x218] sm:$0xff]
    %v122 = vld [vmem:[#allocation2 + $0x220] sm:$0xff]
    %v123 = vld [vmem:[#allocation2 + $0x228] sm:$0xff]
    %v124 = vld [vmem:[#allocation2 + $0x230] sm:$0xff]
    %v125 = vld [vmem:[#allocation2 + $0x238] sm:$0xff]
    %v126 = vld [vmem:[#allocation2 + $0x240] sm:$0xff]
    %v127 = vld [vmem:[#allocation2 + $0x248] sm:$0xff]
    %v128 = vld [vmem:[#allocation2 + $0x250] sm:$0xff]
    %v129 = vld [vmem:[#allocation2 + $0x258] sm:$0xff]
    %v130 = vld [vmem:[#allocation2 + $0x260] sm:$0xff]
    %v131 = vld [vmem:[#allocation2 + $0x268] sm:$0xff]
    %v132 = vld [vmem:[#allocation2 + $0x270] sm:$0xff]
    %v133 = vld [vmem:[#allocation2 + $0x278] sm:$0xff]
    %v134 = vld [vmem:[#allocation2 + $0x280] sm:$0xff]
    %v135 = vld [vmem:[#allocation2 + $0x288] sm:$0xff]
    %v136 = vld [vmem:[#allocation2 + $0x290] sm:$0xff]
    %v137 = vld [vmem:[#allocation2 + $0x298] sm:$0xff]
    %v138 = vld [vmem:[#allocation2 + $0x2a0] sm:$0xff]
    %v139 = vld [vmem:[#allocation2 + $0x2a8] sm:$0xff]
    %v140 = vld [vmem:[#allocation2 + $0x2b0] sm:$0xff]
    %v141 = vld [vmem:[#allocation2 + $0x2b8] sm:$0xff]
    %v142 = vld [vmem:[#allocation2 + $0x2c0] sm:$0xff]
    %v143 = vld [vmem:[#allocation2 + $0x2c8] sm:$0xff]
    %v144 = vld [vmem:[#allocation2 + $0x2d0] sm:$0x7]
    %v145 = vld [vmem:[#allocation2 + $0x2d8] sm:$0x7]
    %v146 = vld [vmem:[#allocation2 + $0x2e0] sm:$0x7]
    %v147 = vld [vmem:[#allocation2 + $0x2e8] sm:$0x7]
    %v148 = vld [vmem:[#allocation2 + $0x2f0] sm:$0x7]
    %vm149 = vcmask 154624
    %v151 = vsel %vm149, %v53, 0
    %vm153 = vcmask 1042432
    %v155 = vsel %vm153, %v144, 0
    %v158 = vsel %vm153, %v145, 0
    %v161 = vsel %vm153, %v146, 0
    %v164 = vsel %vm153, %v147, 0
    %v167 = vsel %vm153, %v148, 0
    %169 = vmatprep.subr.mxu0 %v130
    %170 = vmatpush1.msra.mxu0 %v129
    %171 = vmatprep.subr.mxu0 %v125
    %172 = vmatpush1.msra.mxu0 %v124
    %173 = vmatprep.subr.mxu0 %v120
    %174 = vmatpush1.msra.mxu0 %v119
    %175 = vmatprep.subr.mxu0 %v115
    %176 = vmatpush1.msra.mxu0 %v114
    %177 = vmatprep.subr.mxu0 %v110
    %178 = vmatpush1.msra.mxu0 %v109
    %179 = vmatprep.subr.mxu0 %v105
    %180 = vmatpush1.msra.mxu0 %v104
    %181 = vmatprep.subr.mxu0 %v100
    %182 = vmatpush1.msra.mxu0 %v99
    %183 = vmatprep.subr.mxu0 %v95
    %184 = vmatpush1.msra.mxu0 %v94
    %185 = vmatprep.subr.mxu0 %v90
    %186 = vmatpush1.msra.mxu0 %v89
    %187 = vmatprep.subr.mxu0 %v85
    %188 = vmatpush1.msra.mxu0 %v84
    %189 = vmatprep.subr.mxu0 %v80
    %190 = vmatpush1.msra.mxu0 %v79
    %191 = vmatprep.subr.mxu0 %v75
    %192 = vmatpush1.msra.mxu0 %v74
    %193 = vmatprep.subr.mxu0 %v70
    %194 = vmatpush1.msra.mxu0 %v69
    %195 = vmatprep.subr.mxu0 %v65
    %196 = vmatpush1.msra.mxu0 %v64
    %197 = vmatprep.subr.mxu0 %v60
    %198 = vmatpush1.msra.mxu0 %v59
    %199 = vmatprep.subr.mxu0 %v55
    %200 = vmatpush1.msra.mxu0 %v54
    %201 = vmatprep.subr.mxu0 0.0
    %202 = vmatpush2.msra.mxu0 0.0
    %203 = vmatprep.subr.mxu0 0.0
    %204 = vmatpush2.msra.mxu0 0.0
    %205 = vmatprep.subr.mxu0 0.0
    %206 = vmatpush2.msra.mxu0 0.0
    %207 = vmatprep.subr.mxu0 0.0
    %208 = vmatpush2.msra.mxu0 0.0
    %209 = vmatprep.subr.mxu0 0.0
    %210 = vmatpush2.msra.mxu0 0.0
    %211 = vmatprep.subr.mxu0 0.0
    %212 = vmatpush2.msra.mxu0 0.0
    %213 = vmatprep.subr.mxu0 0.0
    %214 = vmatpush2.msra.mxu0 0.0
    %215 = vmatprep.subr.mxu0 0.0
    %216 = vmatpush2.msra.mxu0 0.0
    %217 = vmatprep.subr.mxu0 0.0
    %218 = vmatpush2.msra.mxu0 0.0
    %219 = vmatprep.subr.mxu0 0.0
    %220 = vmatpush2.msra.mxu0 0.0
    %221 = vmatprep.subr.mxu0 0.0
    %222 = vmatpush2.msra.mxu0 0.0
    %223 = vmatprep.subr.mxu0 0.0
    %224 = vmatpush2.msra.mxu0 0.0
    %225 = vmatprep.subr.mxu0 0.0
    %226 = vmatpush2.msra.mxu0 0.0
    %227 = vmatprep.subr.mxu0 %v158
    %228 = vmatpush2.msra.mxu0 %v155
    %229 = vmatprep.subr.mxu0 %v140
    %230 = vmatpush2.msra.mxu0 %v139
    %231 = vmatprep.subr.mxu0 %v135
    %232 = vmatpush2.msra.mxu0 %v134
    %233 = vmatprep.mubr.f32.mxu0 %v151
    %234 = vmatmul.mubr.f32.gmra.mxu0 %v52
    %v235 = vpop.f32.mrf.mxu0
    %v236 = vadd.f32 0.0, %v235
    %v237 = vpop.f32.mrf.mxu0
    %v238 = vadd.f32 0.0, %v237
    %239 = vdwg.mxu0
    %240 = vmatprep.subr.mxu0 %v132
    %241 = vmatpush1.msra.mxu0 %v131
    %242 = vmatprep.subr.mxu0 %v127
    %243 = vmatpush1.msra.mxu0 %v126
    %244 = vmatprep.subr.mxu0 %v122
    %245 = vmatpush1.msra.mxu0 %v121
    %246 = vmatprep.subr.mxu0 %v117
    %247 = vmatpush1.msra.mxu0 %v116
    %248 = vmatprep.subr.mxu0 %v112
    %249 = vmatpush1.msra.mxu0 %v111
    %250 = vmatprep.subr.mxu0 %v107
    %251 = vmatpush1.msra.mxu0 %v106
    %252 = vmatprep.subr.mxu0 %v102
    %253 = vmatpush1.msra.mxu0 %v101
    %254 = vmatprep.subr.mxu0 %v97
    %255 = vmatpush1.msra.mxu0 %v96
    %256 = vmatprep.subr.mxu0 %v92
    %257 = vmatpush1.msra.mxu0 %v91
    %258 = vmatprep.subr.mxu0 %v87
    %259 = vmatpush1.msra.mxu0 %v86
    %260 = vmatprep.subr.mxu0 %v82
    %261 = vmatpush1.msra.mxu0 %v81
    %262 = vmatprep.subr.mxu0 %v77
    %263 = vmatpush1.msra.mxu0 %v76
    %264 = vmatprep.subr.mxu0 %v72
    %265 = vmatpush1.msra.mxu0 %v71
    %266 = vmatprep.subr.mxu0 %v67
    %267 = vmatpush1.msra.mxu0 %v66
    %268 = vmatprep.subr.mxu0 %v62
    %269 = vmatpush1.msra.mxu0 %v61
    %270 = vmatprep.subr.mxu0 %v57
    %271 = vmatpush1.msra.mxu0 %v56
    %272 = vmatprep.subr.mxu0 0.0
    %273 = vmatpush2.msra.mxu0 0.0
    %274 = vmatprep.subr.mxu0 0.0
    %275 = vmatpush2.msra.mxu0 0.0
    %276 = vmatprep.subr.mxu0 0.0
    %277 = vmatpush2.msra.mxu0 0.0
    %278 = vmatprep.subr.mxu0 0.0
    %279 = vmatpush2.msra.mxu0 0.0
    %280 = vmatprep.subr.mxu0 0.0
    %281 = vmatpush2.msra.mxu0 0.0
    %282 = vmatprep.subr.mxu0 0.0
    %283 = vmatpush2.msra.mxu0 0.0
    %284 = vmatprep.subr.mxu0 0.0
    %285 = vmatpush2.msra.mxu0 0.0
    %286 = vmatprep.subr.mxu0 0.0
    %287 = vmatpush2.msra.mxu0 0.0
    %288 = vmatprep.subr.mxu0 0.0
    %289 = vmatpush2.msra.mxu0 0.0
    %290 = vmatprep.subr.mxu0 0.0
    %291 = vmatpush2.msra.mxu0 0.0
    %292 = vmatprep.subr.mxu0 0.0
    %293 = vmatpush2.msra.mxu0 0.0
    %294 = vmatprep.subr.mxu0 0.0
    %295 = vmatpush2.msra.mxu0 0.0
    %296 = vmatprep.subr.mxu0 0.0
    %297 = vmatpush2.msra.mxu0 0.0
    %298 = vmatprep.subr.mxu0 %v164
    %299 = vmatpush2.msra.mxu0 %v161
    %300 = vmatprep.subr.mxu0 %v142
    %301 = vmatpush2.msra.mxu0 %v141
    %302 = vmatprep.subr.mxu0 %v137
    %303 = vmatpush2.msra.mxu0 %v136
    %304 = vmatprep.mubr.f32.mxu0 %v151
    %305 = vmatmul.mubr.f32.gmra.mxu0 %v52
    %v306 = vpop.f32.mrf.mxu0
    %v307 = vadd.f32 0.0, %v306
    %v308 = vpop.f32.mrf.mxu0
    %v309 = vadd.f32 0.0, %v308
    %310 = vdwg.mxu0
    %311 = vmatprep.subr.mxu0 0.0
    %312 = vmatpush1.msra.mxu0 %v133
    %313 = vmatprep.subr.mxu0 0.0
    %314 = vmatpush1.msra.mxu0 %v128
    %315 = vmatprep.subr.mxu0 0.0
    %316 = vmatpush1.msra.mxu0 %v123
    %317 = vmatprep.subr.mxu0 0.0
    %318 = vmatpush1.msra.mxu0 %v118
    %319 = vmatprep.subr.mxu0 0.0
    %320 = vmatpush1.msra.mxu0 %v113
    %321 = vmatprep.subr.mxu0 0.0
    %322 = vmatpush1.msra.mxu0 %v108
    %323 = vmatprep.subr.mxu0 0.0
    %324 = vmatpush1.msra.mxu0 %v103
    %325 = vmatprep.subr.mxu0 0.0
    %326 = vmatpush1.msra.mxu0 %v98
    %327 = vmatprep.subr.mxu0 0.0
    %328 = vmatpush1.msra.mxu0 %v93
    %329 = vmatprep.subr.mxu0 0.0
    %330 = vmatpush1.msra.mxu0 %v88
    %331 = vmatprep.subr.mxu0 0.0
    %332 = vmatpush1.msra.mxu0 %v83
    %333 = vmatprep.subr.mxu0 0.0
    %334 = vmatpush1.msra.mxu0 %v78
    %335 = vmatprep.subr.mxu0 0.0
    %336 = vmatpush1.msra.mxu0 %v73
    %337 = vmatprep.subr.mxu0 0.0
    %338 = vmatpush1.msra.mxu0 %v68
    %339 = vmatprep.subr.mxu0 0.0
    %340 = vmatpush1.msra.mxu0 %v63
    %341 = vmatprep.subr.mxu0 0.0
    %342 = vmatpush1.msra.mxu0 %v58
    %343 = vmatprep.subr.mxu0 0.0
    %344 = vmatpush2.msra.mxu0 0.0
    %345 = vmatprep.subr.mxu0 0.0
    %346 = vmatpush2.msra.mxu0 0.0
    %347 = vmatprep.subr.mxu0 0.0
    %348 = vmatpush2.msra.mxu0 0.0
    %349 = vmatprep.subr.mxu0 0.0
    %350 = vmatpush2.msra.mxu0 0.0
    %351 = vmatprep.subr.mxu0 0.0
    %352 = vmatpush2.msra.mxu0 0.0
    %353 = vmatprep.subr.mxu0 0.0
    %354 = vmatpush2.msra.mxu0 0.0
    %355 = vmatprep.subr.mxu0 0.0
    %356 = vmatpush2.msra.mxu0 0.0
    %357 = vmatprep.subr.mxu0 0.0
    %358 = vmatpush2.msra.mxu0 0.0
    %359 = vmatprep.subr.mxu0 0.0
    %360 = vmatpush2.msra.mxu0 0.0
    %361 = vmatprep.subr.mxu0 0.0
    %362 = vmatpush2.msra.mxu0 0.0
    %363 = vmatprep.subr.mxu0 0.0
    %364 = vmatpush2.msra.mxu0 0.0
    %365 = vmatprep.subr.mxu0 0.0
    %366 = vmatpush2.msra.mxu0 0.0
    %367 = vmatprep.subr.mxu0 0.0
    %368 = vmatpush2.msra.mxu0 0.0
    %369 = vmatprep.subr.mxu0 0.0
    %370 = vmatpush2.msra.mxu0 %v167
    %371 = vmatprep.subr.mxu0 0.0
    %372 = vmatpush2.msra.mxu0 %v143
    %373 = vmatprep.subr.mxu0 0.0
    %374 = vmatpush2.msra.mxu0 %v138
    %375 = vmatprep.mubr.f32.mxu0 %v151
    %376 = vmatmul.mubr.f32.gmra.mxu0 %v52
    %v377 = vpop.f32.mrf.mxu0
    %v378 = vadd.f32 0.0, %v377
    %v379 = vpop.f32.mrf.mxu0
    %380 = vdwg.mxu0
    %383 = vrot.lane.b32.xlu0 %v238, 112
    %v384 = vpop.permute.xlu0 %383
    %385 = vrot.lane.b32.xlu0 %v307, 112
    %v386 = vpop.permute.xlu0 %385
    %vm387 = vcmask 916480
    %v388 = vsel %vm387, %v384, %v386
    %v391 = vmax.f32 %v236, %v388
    %v392 = vmax.f32 %v238, %v386
    %395 = vrot.lane.b32.xlu0 %v309, 112
    %v396 = vpop.permute.xlu0 %395
    %397 = vrot.lane.b32.xlu0 %v378, 112
    %v398 = vpop.permute.xlu0 %397
    %v399 = vsel %vm387, %v396, %v398
    %v402 = vmax.f32 %v307, %v399
    %v403 = vmax.f32 %v309, %v398
    %406 = vrot.lane.b32.xlu0 %v402, 96
    %v407 = vpop.permute.xlu0 %406
    %408 = vrot.lane.b32.xlu0 %v403, 96
    %v409 = vpop.permute.xlu0 %408
    %vm410 = vcmask 785408
    %v411 = vsel %vm410, %v407, %v409
    %v414 = vmax.f32 %v391, %v411
    %v415 = vmax.f32 %v392, %v409
    %v416 = vld [vmem:[%s2] sm:$0x3]
    %v418 = vlaneseq
    %v419 = vshrl.u32 %v418, 7
    %v420 = vsub.s32 0, %v419
    %v421 = vrot.slane %v416, %v420
    %v422 = vlaneseq
    %v423 = vshrl.u32 %v422, 7
    %v424 = vsub.s32 1, %v423
    %v425 = vrot.slane %v416, %v424
    %v428 = vadd.f32 %v414, %v421
    %v429 = vadd.f32 %v415, %v425
    %v430 = vmax.f32 %v428, 0.0
    %v431 = vmax.f32 %v429, 0.0
    %v432 = vld [vmem:[%s3] sm:$0xff]
    %v433 = vld [vmem:[%s3 + $0x8] sm:$0xff]
    %v434 = vld [vmem:[%s3 + $0x10] sm:$0xff]
    %v435 = vld [vmem:[%s3 + $0x18] sm:$0xff]
    %v436 = vld [vmem:[%s3 + $0x20] sm:$0xff]
    %v437 = vld [vmem:[%s3 + $0x28] sm:$0xff]
    %v438 = vld [vmem:[%s3 + $0x30] sm:$0xff]
    %v439 = vld [vmem:[%s3 + $0x38] sm:$0xff]
    %v440 = vld [vmem:[%s3 + $0x40] sm:$0xff]
    %v441 = vld [vmem:[%s3 + $0x48] sm:$0xff]
    %v442 = vld [vmem:[%s3 + $0x50] sm:$0xff]
    %v443 = vld [vmem:[%s3 + $0x58] sm:$0xff]
    %v444 = vld [vmem:[%s3 + $0x60] sm:$0xff]
    %v445 = vld [vmem:[%s3 + $0x68] sm:$0xff]
    %v446 = vld [vmem:[%s3 + $0x70] sm:$0xff]
    %v447 = vld [vmem:[%s3 + $0x78] sm:$0xff]
    %v448 = vld [vmem:[%s3 + $0x80] sm:$0xff]
    %v449 = vld [vmem:[%s3 + $0x88] sm:$0xff]
    %v450 = vld [vmem:[%s4] sm:$0x1]
    %v452 = vlaneseq
    %v453 = vshrl.u32 %v452, 7
    %v454 = vsub.s32 0, %v453
    %v455 = vrot.slane %v450, %v454
    %vm457 = vcmask 130048
    %v459 = vsel %vm457, %v431, 0
    %461 = vmatprep.subr.mxu0 0.0
    %462 = vmatpush1.msra.mxu0 %v447
    %463 = vmatprep.subr.mxu0 0.0
    %464 = vmatpush1.msra.mxu0 %v446
    %465 = vmatprep.subr.mxu0 0.0
    %466 = vmatpush1.msra.mxu0 %v445
    %467 = vmatprep.subr.mxu0 0.0
    %468 = vmatpush1.msra.mxu0 %v444
    %469 = vmatprep.subr.mxu0 0.0
    %470 = vmatpush1.msra.mxu0 %v443
    %471 = vmatprep.subr.mxu0 0.0
    %472 = vmatpush1.msra.mxu0 %v442
    %473 = vmatprep.subr.mxu0 0.0
    %474 = vmatpush1.msra.mxu0 %v441
    %475 = vmatprep.subr.mxu0 0.0
    %476 = vmatpush1.msra.mxu0 %v440
    %477 = vmatprep.subr.mxu0 0.0
    %478 = vmatpush1.msra.mxu0 %v439
    %479 = vmatprep.subr.mxu0 0.0
    %480 = vmatpush1.msra.mxu0 %v438
    %481 = vmatprep.subr.mxu0 0.0
    %482 = vmatpush1.msra.mxu0 %v437
    %483 = vmatprep.subr.mxu0 0.0
    %484 = vmatpush1.msra.mxu0 %v436
    %485 = vmatprep.subr.mxu0 0.0
    %486 = vmatpush1.msra.mxu0 %v435
    %487 = vmatprep.subr.mxu0 0.0
    %488 = vmatpush1.msra.mxu0 %v434
    %489 = vmatprep.subr.mxu0 0.0
    %490 = vmatpush1.msra.mxu0 %v433
    %491 = vmatprep.subr.mxu0 0.0
    %492 = vmatpush1.msra.mxu0 %v432
    %493 = vmatprep.subr.mxu0 0.0
    %494 = vmatpush2.msra.mxu0 0.0
    %495 = vmatprep.subr.mxu0 0.0
    %496 = vmatpush2.msra.mxu0 0.0
    %497 = vmatprep.subr.mxu0 0.0
    %498 = vmatpush2.msra.mxu0 0.0
    %499 = vmatprep.subr.mxu0 0.0
    %500 = vmatpush2.msra.mxu0 0.0
    %501 = vmatprep.subr.mxu0 0.0
    %502 = vmatpush2.msra.mxu0 0.0
    %503 = vmatprep.subr.mxu0 0.0
    %504 = vmatpush2.msra.mxu0 0.0
    %505 = vmatprep.subr.mxu0 0.0
    %506 = vmatpush2.msra.mxu0 0.0
    %507 = vmatprep.subr.mxu0 0.0
    %508 = vmatpush2.msra.mxu0 0.0
    %509 = vmatprep.subr.mxu0 0.0
    %510 = vmatpush2.msra.mxu0 0.0
    %511 = vmatprep.subr.mxu0 0.0
    %512 = vmatpush2.msra.mxu0 0.0
    %513 = vmatprep.subr.mxu0 0.0
    %514 = vmatpush2.msra.mxu0 0.0
    %515 = vmatprep.subr.mxu0 0.0
    %516 = vmatpush2.msra.mxu0 0.0
    %517 = vmatprep.subr.mxu0 0.0
    %518 = vmatpush2.msra.mxu0 0.0
    %519 = vmatprep.subr.mxu0 0.0
    %520 = vmatpush2.msra.mxu0 0.0
    %521 = vmatprep.subr.mxu0 0.0
    %522 = vmatpush2.msra.mxu0 %v449
    %523 = vmatprep.subr.mxu0 0.0
    %524 = vmatpush2.msra.mxu0 %v448
    %525 = vmatprep.mubr.f32.mxu0 %v459
    %526 = vmatmul.mubr.f32.gmra.mxu0 %v430
    %v527 = vpop.f32.mrf.mxu0
    %v528 = vadd.f32 %v455, %v527
    %v529 = vpop.f32.mrf.mxu0
    %530 = vdwg.mxu0
    %v531 = vmax.f32 %v528, 0.0
    %v532 = vld [vmem:[%s5] sm:$0xff]
    %v533 = vld [vmem:[%s5 + $0x8] sm:$0xff]
    %v534 = vld [vmem:[%s5 + $0x10] sm:$0xff]
    %v535 = vld [vmem:[%s5 + $0x18] sm:$0xff]
    %v536 = vld [vmem:[%s5 + $0x20] sm:$0xff]
    %v537 = vld [vmem:[%s5 + $0x28] sm:$0xff]
    %v538 = vld [vmem:[%s5 + $0x30] sm:$0xff]
    %v539 = vld [vmem:[%s5 + $0x38] sm:$0xff]
    %v540 = vld [vmem:[%s5 + $0x40] sm:$0xff]
    %v541 = vld [vmem:[%s5 + $0x48] sm:$0xff]
    %v542 = vld [vmem:[%s5 + $0x50] sm:$0xff]
    %v543 = vld [vmem:[%s5 + $0x58] sm:$0xff]
    %v544 = vld [vmem:[%s5 + $0x60] sm:$0xff]
    %v545 = vld [vmem:[%s5 + $0x68] sm:$0xff]
    %v546 = vld [vmem:[%s5 + $0x70] sm:$0xff]
    %v547 = vld [vmem:[%s5 + $0x78] sm:$0xff]
    %v548 = vld [vmem:[%s6] sm:$0x1]
    %v550 = vlaneseq
    %v551 = vshrl.u32 %v550, 7
    %v552 = vsub.s32 0, %v551
    %v553 = vrot.slane %v548, %v552
    %555 = vmatprep.subr.mxu0 0.0
    %556 = vmatpush1.msra.mxu0 %v547
    %557 = vmatprep.subr.mxu0 0.0
    %558 = vmatpush1.msra.mxu0 %v546
    %559 = vmatprep.subr.mxu0 0.0
    %560 = vmatpush1.msra.mxu0 %v545
    %561 = vmatprep.subr.mxu0 0.0
    %562 = vmatpush1.msra.mxu0 %v544
    %563 = vmatprep.subr.mxu0 0.0
    %564 = vmatpush1.msra.mxu0 %v543
    %565 = vmatprep.subr.mxu0 0.0
    %566 = vmatpush1.msra.mxu0 %v542
    %567 = vmatprep.subr.mxu0 0.0
    %568 = vmatpush1.msra.mxu0 %v541
    %569 = vmatprep.subr.mxu0 0.0
    %570 = vmatpush1.msra.mxu0 %v540
    %571 = vmatprep.subr.mxu0 0.0
    %572 = vmatpush1.msra.mxu0 %v539
    %573 = vmatprep.subr.mxu0 0.0
    %574 = vmatpush1.msra.mxu0 %v538
    %575 = vmatprep.subr.mxu0 0.0
    %576 = vmatpush1.msra.mxu0 %v537
    %577 = vmatprep.subr.mxu0 0.0
    %578 = vmatpush1.msra.mxu0 %v536
    %579 = vmatprep.subr.mxu0 0.0
    %580 = vmatpush1.msra.mxu0 %v535
    %581 = vmatprep.subr.mxu0 0.0
    %582 = vmatpush1.msra.mxu0 %v534
    %583 = vmatprep.subr.mxu0 0.0
    %584 = vmatpush1.msra.mxu0 %v533
    %585 = vmatprep.subr.mxu0 0.0
    %586 = vmatpush1.msra.mxu0 %v532
    %587 = vmatprep.subr.mxu0 0.0
    %588 = vmatpush2.msra.mxu0 0.0
    %589 = vmatprep.subr.mxu0 0.0
    %590 = vmatpush2.msra.mxu0 0.0
    %591 = vmatprep.subr.mxu0 0.0
    %592 = vmatpush2.msra.mxu0 0.0
    %593 = vmatprep.subr.mxu0 0.0
    %594 = vmatpush2.msra.mxu0 0.0
    %595 = vmatprep.subr.mxu0 0.0
    %596 = vmatpush2.msra.mxu0 0.0
    %597 = vmatprep.subr.mxu0 0.0
    %598 = vmatpush2.msra.mxu0 0.0
    %599 = vmatprep.subr.mxu0 0.0
    %600 = vmatpush2.msra.mxu0 0.0
    %601 = vmatprep.subr.mxu0 0.0
    %602 = vmatpush2.msra.mxu0 0.0
    %603 = vmatprep.subr.mxu0 0.0
    %604 = vmatpush2.msra.mxu0 0.0
    %605 = vmatprep.subr.mxu0 0.0
    %606 = vmatpush2.msra.mxu0 0.0
    %607 = vmatprep.subr.mxu0 0.0
    %608 = vmatpush2.msra.mxu0 0.0
    %609 = vmatprep.subr.mxu0 0.0
    %610 = vmatpush2.msra.mxu0 0.0
    %611 = vmatprep.subr.mxu0 0.0
    %612 = vmatpush2.msra.mxu0 0.0
    %613 = vmatprep.subr.mxu0 0.0
    %614 = vmatpush2.msra.mxu0 0.0
    %615 = vmatprep.subr.mxu0 0.0
    %616 = vmatpush2.msra.mxu0 0.0
    %617 = vmatprep.subr.mxu0 0.0
    %618 = vmatpush2.msra.mxu0 0.0
    %619 = vmatprep.mubr.f32.mxu0 0.0
    %620 = vmatmul.mubr.f32.gmra.mxu0 %v531
    %v621 = vpop.f32.mrf.mxu0
    %v622 = vadd.f32 %v553, %v621
    %v623 = vpop.f32.mrf.mxu0
    %624 = vdwg.mxu0
    %v625 = vmax.f32 %v622, 0.0
    %v626 = vld [vmem:[%s7] sm:$0xff]
    %v627 = vld [vmem:[%s7 + $0x8] sm:$0xff]
    %v628 = vld [vmem:[%s7 + $0x10] sm:$0xff]
    %v629 = vld [vmem:[%s7 + $0x18] sm:$0xff]
    %v630 = vld [vmem:[%s7 + $0x20] sm:$0xff]
    %v631 = vld [vmem:[%s7 + $0x28] sm:$0xff]
    %v632 = vld [vmem:[%s7 + $0x30] sm:$0xff]
    %v633 = vld [vmem:[%s7 + $0x38] sm:$0xff]
    %v634 = vld [vmem:[%s8] sm:$0x1]
    %v636 = vlaneseq
    %v637 = vshrl.u32 %v636, 7
    %v638 = vsub.s32 0, %v637
    %v639 = vrot.slane %v634, %v638
    %vm641 = vcmask 523264
    %v643 = vsel %vm641, %v625, 0
    %645 = vmatprep.subr.mxu0 0.0
    %646 = vmatpush1.msra.mxu0 0.0
    %647 = vmatprep.subr.mxu0 0.0
    %648 = vmatpush1.msra.mxu0 0.0
    %649 = vmatprep.subr.mxu0 0.0
    %650 = vmatpush1.msra.mxu0 0.0
    %651 = vmatprep.subr.mxu0 0.0
    %652 = vmatpush1.msra.mxu0 0.0
    %653 = vmatprep.subr.mxu0 0.0
    %654 = vmatpush1.msra.mxu0 0.0
    %655 = vmatprep.subr.mxu0 0.0
    %656 = vmatpush1.msra.mxu0 0.0
    %657 = vmatprep.subr.mxu0 0.0
    %658 = vmatpush1.msra.mxu0 0.0
    %659 = vmatprep.subr.mxu0 0.0
    %660 = vmatpush1.msra.mxu0 0.0
    %661 = vmatprep.subr.mxu0 0.0
    %662 = vmatpush1.msra.mxu0 %v633
    %663 = vmatprep.subr.mxu0 0.0
    %664 = vmatpush1.msra.mxu0 %v632
    %665 = vmatprep.subr.mxu0 0.0
    %666 = vmatpush1.msra.mxu0 %v631
    %667 = vmatprep.subr.mxu0 0.0
    %668 = vmatpush1.msra.mxu0 %v630
    %669 = vmatprep.subr.mxu0 0.0
    %670 = vmatpush1.msra.mxu0 %v629
    %671 = vmatprep.subr.mxu0 0.0
    %672 = vmatpush1.msra.mxu0 %v628
    %673 = vmatprep.subr.mxu0 0.0
    %674 = vmatpush1.msra.mxu0 %v627
    %675 = vmatprep.subr.mxu0 0.0
    %676 = vmatpush1.msra.mxu0 %v626
    %677 = vmatprep.subr.mxu0 0.0
    %678 = vmatpush2.msra.mxu0 0.0
    %679 = vmatprep.subr.mxu0 0.0
    %680 = vmatpush2.msra.mxu0 0.0
    %681 = vmatprep.subr.mxu0 0.0
    %682 = vmatpush2.msra.mxu0 0.0
    %683 = vmatprep.subr.mxu0 0.0
    %684 = vmatpush2.msra.mxu0 0.0
    %685 = vmatprep.subr.mxu0 0.0
    %686 = vmatpush2.msra.mxu0 0.0
    %687 = vmatprep.subr.mxu0 0.0
    %688 = vmatpush2.msra.mxu0 0.0
    %689 = vmatprep.subr.mxu0 0.0
    %690 = vmatpush2.msra.mxu0 0.0
    %691 = vmatprep.subr.mxu0 0.0
    %692 = vmatpush2.msra.mxu0 0.0
    %693 = vmatprep.subr.mxu0 0.0
    %694 = vmatpush2.msra.mxu0 0.0
    %695 = vmatprep.subr.mxu0 0.0
    %696 = vmatpush2.msra.mxu0 0.0
    %697 = vmatprep.subr.mxu0 0.0
    %698 = vmatpush2.msra.mxu0 0.0
    %699 = vmatprep.subr.mxu0 0.0
    %700 = vmatpush2.msra.mxu0 0.0
    %701 = vmatprep.subr.mxu0 0.0
    %702 = vmatpush2.msra.mxu0 0.0
    %703 = vmatprep.subr.mxu0 0.0
    %704 = vmatpush2.msra.mxu0 0.0
    %705 = vmatprep.subr.mxu0 0.0
    %706 = vmatpush2.msra.mxu0 0.0
    %707 = vmatprep.subr.mxu0 0.0
    %708 = vmatpush2.msra.mxu0 0.0
    %709 = vmatprep.mubr.f32.mxu0 0.0
    %710 = vmatmul.mubr.f32.gmra.mxu0 %v643
    %v711 = vpop.f32.mrf.mxu0
    %v712 = vadd.f32 %v639, %v711
    %v713 = vpop.f32.mrf.mxu0
    %714 = vdwg.mxu0
    %v715 = vtanh.pop %v712
    %v716 = vld [vmem:[%s9] sm:$0xff]
    %v717 = vld [vmem:[%s9 + $0x8] sm:$0xff]
    %v718 = vld [vmem:[%s9 + $0x10] sm:$0xff]
    %v719 = vld [vmem:[%s9 + $0x18] sm:$0xff]
    %v720 = vld [vmem:[%s9 + $0x20] sm:$0xff]
    %v721 = vld [vmem:[%s9 + $0x28] sm:$0xff]
    %v722 = vld [vmem:[%s9 + $0x30] sm:$0xff]
    %v723 = vld [vmem:[%s9 + $0x38] sm:$0xff]
    %v724 = vld [vmem:[%s9 + $0x40] sm:$0xff]
    %v725 = vld [vmem:[%s9 + $0x48] sm:$0xff]
    %v726 = vld [vmem:[%s9 + $0x50] sm:$0xff]
    %v727 = vld [vmem:[%s9 + $0x58] sm:$0xff]
    %v728 = vld [vmem:[%s9 + $0x60] sm:$0xff]
    %v729 = vld [vmem:[%s9 + $0x68] sm:$0xff]
    %v730 = vld [vmem:[%s9 + $0x70] sm:$0xff]
    %v731 = vld [vmem:[%s9 + $0x78] sm:$0xff]
    %v732 = vld [vmem:[%s10] sm:$0x1]
    %v734 = vlaneseq
    %v735 = vshrl.u32 %v734, 7
    %v736 = vsub.s32 0, %v735
    %v737 = vrot.slane %v732, %v736
    %739 = vmatprep.subr.mxu0 0.0
    %740 = vmatpush1.msra.mxu0 %v731
    %741 = vmatprep.subr.mxu0 0.0
    %742 = vmatpush1.msra.mxu0 %v730
    %743 = vmatprep.subr.mxu0 0.0
    %744 = vmatpush1.msra.mxu0 %v729
    %745 = vmatprep.subr.mxu0 0.0
    %746 = vmatpush1.msra.mxu0 %v728
    %747 = vmatprep.subr.mxu0 0.0
    %748 = vmatpush1.msra.mxu0 %v727
    %749 = vmatprep.subr.mxu0 0.0
    %750 = vmatpush1.msra.mxu0 %v726
    %751 = vmatprep.subr.mxu0 0.0
    %752 = vmatpush1.msra.mxu0 %v725
    %753 = vmatprep.subr.mxu0 0.0
    %754 = vmatpush1.msra.mxu0 %v724
    %755 = vmatprep.subr.mxu0 0.0
    %756 = vmatpush1.msra.mxu0 %v723
    %757 = vmatprep.subr.mxu0 0.0
    %758 = vmatpush1.msra.mxu0 %v722
    %759 = vmatprep.subr.mxu0 0.0
    %760 = vmatpush1.msra.mxu0 %v721
    %761 = vmatprep.subr.mxu0 0.0
    %762 = vmatpush1.msra.mxu0 %v720
    %763 = vmatprep.subr.mxu0 0.0
    %764 = vmatpush1.msra.mxu0 %v719
    %765 = vmatprep.subr.mxu0 0.0
    %766 = vmatpush1.msra.mxu0 %v718
    %767 = vmatprep.subr.mxu0 0.0
    %768 = vmatpush1.msra.mxu0 %v717
    %769 = vmatprep.subr.mxu0 0.0
    %770 = vmatpush1.msra.mxu0 %v716
    %771 = vmatprep.subr.mxu0 0.0
    %772 = vmatpush2.msra.mxu0 0.0
    %773 = vmatprep.subr.mxu0 0.0
    %774 = vmatpush2.msra.mxu0 0.0
    %775 = vmatprep.subr.mxu0 0.0
    %776 = vmatpush2.msra.mxu0 0.0
    %777 = vmatprep.subr.mxu0 0.0
    %778 = vmatpush2.msra.mxu0 0.0
    %779 = vmatprep.subr.mxu0 0.0
    %780 = vmatpush2.msra.mxu0 0.0
    %781 = vmatprep.subr.mxu0 0.0
    %782 = vmatpush2.msra.mxu0 0.0
    %783 = vmatprep.subr.mxu0 0.0
    %784 = vmatpush2.msra.mxu0 0.0
    %785 = vmatprep.subr.mxu0 0.0
    %786 = vmatpush2.msra.mxu0 0.0
    %787 = vmatprep.subr.mxu0 0.0
    %788 = vmatpush2.msra.mxu0 0.0
    %789 = vmatprep.subr.mxu0 0.0
    %790 = vmatpush2.msra.mxu0 0.0
    %791 = vmatprep.subr.mxu0 0.0
    %792 = vmatpush2.msra.mxu0 0.0
    %793 = vmatprep.subr.mxu0 0.0
    %794 = vmatpush2.msra.mxu0 0.0
    %795 = vmatprep.subr.mxu0 0.0
    %796 = vmatpush2.msra.mxu0 0.0
    %797 = vmatprep.subr.mxu0 0.0
    %798 = vmatpush2.msra.mxu0 0.0
    %799 = vmatprep.subr.mxu0 0.0
    %800 = vmatpush2.msra.mxu0 0.0
    %801 = vmatprep.subr.mxu0 0.0
    %802 = vmatpush2.msra.mxu0 0.0
    %803 = vmatprep.mubr.f32.mxu0 0.0
    %804 = vmatmul.mubr.f32.gmra.mxu0 %v715
    %v805 = vpop.f32.mrf.mxu0
    %v806 = vadd.f32 %v737, %v805
    %v807 = vpop.f32.mrf.mxu0
    %808 = vdwg.mxu0
    %vm809 = vcmask 56320
    %v810 = vsel %vm809, %v806, -inf
    %811 = vmax.xlane.f32.xlu0 %v810
    %v812 = vpop.xlane.xlu0 %811
    %v813 = vsub.f32 %v806, %v812
    %v814 = vmul.f32 %v813, 1.442695
    %v815 = vpow.pop %v814
    %v816 = vsel %vm809, %v815, 0.0
    %817 = vadd.xlane.f32.xlu0 %v816
    %v818 = vpop.xlane.xlu0 %817
    %v819 = vlog2.pop %v818
    %v820 = vmul.f32 %v819, 0.6931472
    %v821 = vsub.f32 %v813, %v820
    %v822 = vsel %vm809, %v821, %v806
    %vm823 = vcmask 64512
    %824 = vst.msk [vmem:[%s11] sm:$0xff] %vm823, %v822
    // Predicated region
    $region50: #{acmodel_forward.1} parent=1 // pred_check
      _
    $region51: #{acmodel_forward.1} parent=1 // pred_check_branch
      %826 = sbr.rel (0) target = $region53
    $region52: #{acmodel_forward.1} parent=1 // pred_region
      _
    $region53: #{acmodel_forward.1} parent=1 // pred_fallthru
      _
    // Predicated region
    $region54: #{acmodel_forward.1} parent=1 // pred_check
      _
    $region55: #{acmodel_forward.1} parent=1 // pred_check_branch
      %828 = sbr.rel (0) target = $region57
    $region56: #{acmodel_forward.1} parent=1 // pred_region
      _
    $region57: #{acmodel_forward.1} parent=1 // pred_fallthru
      _
    %829 = vsyncpa [#allocation3], 1

</llo_original>
